<compile_context>
chip_gen: v6e
topology: v6e:2x2x1
jax: 0.10.0
libtpu: 0.0.40
codegen_flags: <defaults>
</compile_context>

<pallas_src>
import numpy as np
import jax
import jax.numpy as jnp
from jax.experimental import pallas as pl
from jax.experimental.pallas import tpu as pltpu


# ----------------------------- parameter construction (plain numpy, deterministic) ---------------

def _hann_periodic(win_length: int) -> np.ndarray:
    # scipy.signal.get_window('hann', win_length, fftbins=True)
    n = np.arange(win_length)
    return 0.5 - 0.5 * np.cos(2.0 * np.pi * n / win_length)


def _fourier_basis(filter_length: int):
    """Real/imag DFT basis rows 0..cutoff-1, windowed. Matches STFT.__init__ / librosa stft."""
    cutoff = filter_length // 2 + 1
    fb = np.fft.fft(np.eye(filter_length))          # fb[k, n] = exp(-2pi i k n / N)
    real = np.real(fb[:cutoff, :])
    imag = np.imag(fb[:cutoff, :])
    window = _hann_periodic(filter_length)          # win_length == filter_length here
    real = real * window[None, :]
    imag = imag * window[None, :]
    return real.astype(np.float32), imag.astype(np.float32), cutoff


def _hz_to_mel_htk(f):
    return 2595.0 * np.log10(1.0 + np.asarray(f, dtype=np.float64) / 700.0)


def _mel_to_hz_htk(m):
    return 700.0 * (10.0 ** (np.asarray(m, dtype=np.float64) / 2595.0) - 1.0)


def _mel_filterbank(sr, n_fft, n_mels, fmin=0.0, fmax=None):
    """librosa.filters.mel(..., htk=True, norm='slaney') re-implemented deterministically."""
    if fmax is None:
        fmax = float(sr) / 2.0
    n_freqs = n_fft // 2 + 1
    fftfreqs = np.linspace(0.0, float(sr) / 2.0, n_freqs)

    mel_min = _hz_to_mel_htk(fmin)
    mel_max = _hz_to_mel_htk(fmax)
    mel_pts = np.linspace(mel_min, mel_max, n_mels + 2)
    mel_f = _mel_to_hz_htk(mel_pts)

    fdiff = np.diff(mel_f)
    ramps = mel_f[:, None] - fftfreqs[None, :]

    weights = np.zeros((n_mels, n_freqs), dtype=np.float64)
    for i in range(n_mels):
        lower = -ramps[i] / fdiff[i]
        upper = ramps[i + 2] / fdiff[i + 1]
        weights[i] = np.maximum(0.0, np.minimum(lower, upper))

    # slaney normalization (librosa default)
    enorm = 2.0 / (mel_f[2:n_mels + 2] - mel_f[:n_mels])
    weights *= enorm[:, None]
    return weights.astype(np.float32)


# ----------------------------- small helpers ------------------------------------------------------

def _round_up(x, m):
    return ((x + m - 1) // m) * m


def _pad_to(x, rows, cols):
    r, c = x.shape
    return jnp.pad(x, ((0, rows - r), (0, cols - c)))


# ----------------------------- Pallas kernel ------------------------------------------------------

def _make_melspec_kernel(compute_dtype, cutoff_p, precision):
    """Builds the per-frame-tile kernel. One fused MXU pass for the DFT (real|imag), then
    magnitude (VPU/EUP), mel matmul (MXU), log-clamp (EUP). All accumulation in f32."""

    def kernel(frames_ref, basis_ref, mel_t_ref, out_ref):
        f = frames_ref[...]                                                  # (TM, Lp)
        s = jnp.dot(f, basis_ref[...],
                    preferred_element_type=jnp.float32,
                    precision=precision)                                     # (TM, 2*Cp) f32
        s_real = s[:, :cutoff_p]
        s_imag = s[:, cutoff_p:]
        mag = jnp.sqrt(s_real * s_real + s_imag * s_imag)                    # (TM, Cp) f32
        mel = jnp.dot(mag.astype(compute_dtype), mel_t_ref[...],
                      preferred_element_type=jnp.float32,
                      precision=precision)                                   # (TM, Mp) f32
        out_ref[...] = jnp.log(jnp.maximum(mel, 1e-5))

    return kernel


class MelSpectrogramPallas:
    # Frame-tile rows per grid step. 256 is large enough to amortize per-step overhead and keeps
    # double-buffered tiles well inside v7x's 64 MiB VMEM; v5e/v6e (128 MiB) are trivially fine.
    _MAX_TM = 256

    def __init__(self, n_mels, sample_rate, filter_length, hop_length,
                 win_length=None, mel_fmin=0.0, mel_fmax=None,
                 compute_dtype=jnp.bfloat16, precision=None):
        if win_length is None:
            win_length = filter_length
        assert win_length == filter_length, "only win_length == filter_length supported"
        self.filter_length = filter_length
        self.hop_length = hop_length
        self.n_mels = n_mels
        self.compute_dtype = jnp.dtype(compute_dtype)
        # precision only matters for float32 inputs; pass jax.lax.Precision.HIGHEST for exact
        # f32 parity with the librosa/PyTorch reference at large filter_length.
        self.precision = precision

        real, imag, cutoff = _fourier_basis(filter_length)
        self.cutoff = cutoff
        mel_basis = _mel_filterbank(sample_rate, filter_length, n_mels, mel_fmin, mel_fmax)

        # Padded, kernel-friendly layouts (contraction dims zero-padded -> results unchanged).
        self._Lp = _round_up(filter_length, 128)
        self._Cp = _round_up(cutoff, 128)
        self._Mp = _round_up(n_mels, 128)

        basis_r = _pad_to(jnp.asarray(real.T), self._Lp, self._Cp)           # (Lp, Cp)
        basis_i = _pad_to(jnp.asarray(imag.T), self._Lp, self._Cp)           # (Lp, Cp)
        # Fused RHS: a single MXU pass of the frame tile produces [real | imag] spectra.
        self.basis = jnp.concatenate([basis_r, basis_i], axis=1).astype(self.compute_dtype)  # (Lp, 2Cp)
        self.mel_t = _pad_to(jnp.asarray(mel_basis.T),
                             self._Cp, self._Mp).astype(self.compute_dtype)  # (Cp, Mp)

        self._kernel = _make_melspec_kernel(self.compute_dtype, self._Cp, precision)
        self._jit_forward = jax.jit(self._forward)

    # --------------------------------------------------------------------------------------------
    def __call__(self, y):
        """y: (B, T) float32 in [-1, 1]. Returns (1, n_mels, n_frames) float32 — matches the
        PyTorch forward(), which only uses y[0] (librosa stft with center=False)."""
        return self._jit_forward(y)

    # --------------------------------------------------------------------------------------------
    def _frames(self, y0, n_frames):
        """Overlapping analysis frames without an XLA gather (when L % H == 0)."""
        L, H = self.filter_length, self.hop_length
        if L % H == 0:
            r = L // H
            n_chunks = n_frames + r - 1                  # (n_frames-1)*H + L <= T samples used
            chunks = y0[: n_chunks * H].reshape(n_chunks, H)
            # frames[t, j*H:(j+1)*H] == chunks[t + j]  -> r static shifted slices, one concat.
            return jnp.concatenate(
                [chunks[j:j + n_frames, :] for j in range(r)], axis=1)       # (n_frames, L)
        # TODO(synk): L % H != 0 falls back to an XLA gather; true in-kernel framing (manual slab
        # DMA via memory_space=pl.ANY + pltpu.make_async_copy) is not implemented for that case.
        idx = jnp.arange(n_frames)[:, None] * H + jnp.arange(L)[None, :]
        return y0[idx]

    # --------------------------------------------------------------------------------------------
    def _forward(self, y):
        y0 = y[0].astype(jnp.float32)
        T = y0.shape[0]
        L, H = self.filter_length, self.hop_length
        assert T >= L, "audio shorter than filter_length"
        n_frames = 1 + (T - L) // H

        frames = self._frames(y0, n_frames).astype(self.compute_dtype)       # (n_frames, L)

        TM = min(self._MAX_TM, _round_up(n_frames, 16))
        Fp = _round_up(n_frames, TM)
        frames_p = _pad_to(frames, Fp, self._Lp)                             # (Fp, Lp)

        Lp, Cp, Mp = self._Lp, self._Cp, self._Mp
        itemsize = self.compute_dtype.itemsize

        # VMEM budget: double-buffered frame & output tiles + (default double-buffered) resident
        # weights. Explicit limit keeps the kernel well inside v7x's 64 MiB.
        vmem_est = (2 * TM * Lp * itemsize          # frame tiles
                    + 2 * Lp * (2 * Cp) * itemsize  # fused DFT basis
                    + 2 * Cp * Mp * itemsize        # mel filterbank
                    + 2 * TM * Mp * 4)              # f32 output tiles
        vmem_limit = int(min(max(2 * vmem_est + (4 << 20), 16 << 20), 48 << 20))

        cost = pl.CostEstimate(
            flops=2 * Fp * Lp * (2 * Cp) + 2 * Fp * Cp * Mp,
            transcendentals=Fp * Cp + Fp * Mp,                               # sqrt + log
            bytes_accessed=int(frames_p.size * itemsize + self.basis.size * itemsize
                               + self.mel_t.size * itemsize + Fp * Mp * 4),
        )

        out = pl.pallas_call(
            self._kernel,
            out_shape=jax.ShapeDtypeStruct((Fp, Mp), jnp.float32),
            grid=(Fp // TM,),
            in_specs=[
                pl.BlockSpec((TM, Lp), lambda i: (i, 0)),        # frame tiles: pipelined DMA
                pl.BlockSpec((Lp, 2 * Cp), lambda i: (0, 0)),    # fused DFT basis: VMEM-resident
                pl.BlockSpec((Cp, Mp), lambda i: (0, 0)),        # mel filterbank: VMEM-resident
            ],
            out_specs=pl.BlockSpec((TM, Mp), lambda i: (i, 0)),
            compiler_params=pltpu.CompilerParams(
                dimension_semantics=("parallel",),               # independent tiles -> 2 TCs on v7x
                vmem_limit_bytes=vmem_limit),
            cost_estimate=cost,
        )(frames_p, self.basis, self.mel_t)

        mel_out = out[:n_frames, :self.n_mels]                   # (n_frames, n_mels)
        return jnp.transpose(mel_out)[None, :, :]                # (1, n_mels, n_frames)


# ----------------------------- reference (pure JAX, same numeric recipe) -------------------------

def _reference(model: MelSpectrogramPallas, y):
    y0 = y[0].astype(jnp.float32)
    T = y0.shape[0]
    L, H = model.filter_length, model.hop_length
    n_frames = 1 + (T - L) // H
    idx = jnp.arange(n_frames)[:, None] * H + jnp.arange(L)[None, :]
    frames = y0[idx].astype(model.compute_dtype)
    frames = jnp.pad(frames, ((0, 0), (0, model._Lp - L)))
    s = jnp.dot(frames, model.basis,
                preferred_element_type=jnp.float32, precision=model.precision)
    s_real = s[:, :model._Cp]
    s_imag = s[:, model._Cp:]
    mag = jnp.sqrt(s_real * s_real + s_imag * s_imag)
    mel = jnp.dot(mag.astype(model.compute_dtype), model.mel_t,
                  preferred_element_type=jnp.float32, precision=model.precision)
    mel = jnp.log(jnp.maximum(mel, 1e-5))[:, :model.n_mels]
    return jnp.transpose(mel)[None, :, :]


if __name__ == "__main__":
    # Small, deterministic setup.
    n_mels = 8
    sample_rate = 1000
    filter_length = 16     # WINDOW_LENGTH
    hop_length = 4         # HOP_LENGTH
    B, T = 2, 128

    key = jax.random.PRNGKey(0)
    y = jax.random.uniform(key, (B, T), dtype=jnp.float32, minval=-1.0, maxval=1.0)

    n_frames = 1 + (T - filter_length) // hop_length

    # Default fast path: bf16 MXU inputs with f32 accumulation.
    model_bf16 = MelSpectrogramPallas(n_mels, sample_rate, filter_length, hop_length,
                                      compute_dtype=jnp.bfloat16)
    out_bf16 = jax.block_until_ready(model_bf16(y))
    ref_bf16 = jax.block_until_ready(_reference(model_bf16, y))
    assert out_bf16.shape == (1, n_mels, n_frames)
    assert np.allclose(np.asarray(out_bf16), np.asarray(ref_bf16), rtol=2e-3, atol=2e-3)

    # f32 path (use precision=jax.lax.Precision.HIGHEST for exact librosa parity at large n_fft).
    model_f32 = MelSpectrogramPallas(n_mels, sample_rate, filter_length, hop_length,
                                     compute_dtype=jnp.float32)
    out_f32 = jax.block_until_ready(model_f32(y))
    ref_f32 = jax.block_until_ready(_reference(model_f32, y))
    assert out_f32.shape == (1, n_mels, n_frames)
    assert np.allclose(np.asarray(out_f32), np.asarray(ref_f32), rtol=1e-4, atol=1e-4)

    print("KERNEL_OK")
</pallas_src>

<mosaic_0001>
module attributes {stable_mosaic.version = 11 : i64} {
  func.func @kernel(%arg0: i32, %arg1: memref<32x128xbf16, #tpu.memory_space<vmem>>, %arg2: memref<128x256xbf16, #tpu.memory_space<vmem>>, %arg3: memref<128x128xbf16, #tpu.memory_space<vmem>>, %arg4: memref<32x128xf32, #tpu.memory_space<vmem>>) attributes {dimension_semantics = [#tpu.dimension_semantics<parallel>], iteration_bounds = array<i64: 1>, scalar_prefetch = 0 : i64, scratch_operands = 0 : i64, tpu.core_type = #tpu.core_type<tc>, window_params = [{transform_indices = @transform_0, window_bounds = array<i64: 32, 128>}, {pipeline_mode = #tpu.pipeline_mode<synchronous>, transform_indices = @transform_1, window_bounds = array<i64: 128, 256>}, {pipeline_mode = #tpu.pipeline_mode<synchronous>, transform_indices = @transform_2, window_bounds = array<i64: 128, 128>}, {transform_indices = @transform_3, window_bounds = array<i64: 32, 128>}]} {
    %c0 = arith.constant 0 : index
    %c0_0 = arith.constant 0 : index
    %0 = vector.load %arg1[%c0, %c0_0] : memref<32x128xbf16, #tpu.memory_space<vmem>>, vector<32x128xbf16>
    %c0_1 = arith.constant 0 : index
    %c0_2 = arith.constant 0 : index
    %1 = vector.load %arg2[%c0_1, %c0_2] : memref<128x256xbf16, #tpu.memory_space<vmem>>, vector<128x256xbf16>
    %cst = arith.constant dense<0.000000e+00> : vector<32x256xf32>
    %2 = tpu.matmul %0, %1, %cst {dimension_numbers = #tpu.dot_dimension_numbers<[1], [0], [0], [1], [0, 0, 1, 1], [], []>} : vector<32x128xbf16>, vector<128x256xbf16>, vector<32x256xf32> -> vector<32x256xf32>
    %3 = vector.extract_strided_slice %2 {offsets = [0, 0], sizes = [32, 128], strides = [1, 1]} : vector<32x256xf32> to vector<32x128xf32>
    %4 = vector.extract_strided_slice %2 {offsets = [0, 128], sizes = [32, 128], strides = [1, 1]} : vector<32x256xf32> to vector<32x128xf32>
    %5 = arith.mulf %3, %3 : vector<32x128xf32>
    %6 = arith.mulf %4, %4 : vector<32x128xf32>
    %7 = arith.addf %5, %6 : vector<32x128xf32>
    %8 = math.sqrt %7 : vector<32x128xf32>
    %9 = arith.truncf %8 : vector<32x128xf32> to vector<32x128xbf16>
    %c0_3 = arith.constant 0 : index
    %c0_4 = arith.constant 0 : index
    %10 = vector.load %arg3[%c0_3, %c0_4] : memref<128x128xbf16, #tpu.memory_space<vmem>>, vector<128x128xbf16>
    %cst_5 = arith.constant dense<0.000000e+00> : vector<32x128xf32>
    %11 = tpu.matmul %9, %10, %cst_5 {dimension_numbers = #tpu.dot_dimension_numbers<[1], [0], [0], [1], [0, 0, 1, 1], [], []>} : vector<32x128xbf16>, vector<128x128xbf16>, vector<32x128xf32> -> vector<32x128xf32>
    %cst_6 = arith.constant 9.99999974E-6 : f32
    %12 = vector.broadcast %cst_6 : f32 to vector<32x128xf32>
    %13 = arith.maximumf %11, %12 : vector<32x128xf32>
    %14 = math.log %13 : vector<32x128xf32>
    %c0_7 = arith.constant 0 : index
    %c0_8 = arith.constant 0 : index
    %15 = vector.load %arg4[%c0_7, %c0_8] : memref<32x128xf32, #tpu.memory_space<vmem>>, vector<32x128xf32>
    tpu.vector_store %arg4[%c0_7, %c0_8], %14 {strides = array<i32>} : memref<32x128xf32, #tpu.memory_space<vmem>>, vector<32x128xf32>,
    return
  }
  func.func @transform_0(%arg0: i32) -> (i32, i32) {
    %c0_i32 = arith.constant 0 : i32
    %c0_i32_0 = arith.constant 0 : i32
    return %arg0, %c0_i32 : i32, i32
  }
  func.func @transform_1(%arg0: i32) -> (i32, i32) {
    %c0_i32 = arith.constant 0 : i32
    %c0_i32_0 = arith.constant 0 : i32
    %c0_i32_1 = arith.constant 0 : i32
    return %c0_i32, %c0_i32_0 : i32, i32
  }
  func.func @transform_2(%arg0: i32) -> (i32, i32) {
    %c0_i32 = arith.constant 0 : i32
    %c0_i32_0 = arith.constant 0 : i32
    %c0_i32_1 = arith.constant 0 : i32
    return %c0_i32, %c0_i32_0 : i32, i32
  }
  func.func @transform_3(%arg0: i32) -> (i32, i32) {
    %c0_i32 = arith.constant 0 : i32
    %c0_i32_0 = arith.constant 0 : i32
    return %arg0, %c0_i32 : i32, i32
  }
}

</mosaic_0001>

<llo_original>
// kernel: _forward.1
$region0: #{_forward.1}
  #allocation0 [shape = 'u32[]', space=smem, size = 0x4, offset = 0x4, fixed_abs, tag = 'smem constant byte address 0x4 - core index']
  #allocation1 [shape = 'u32[144,128]{1,0:T(1,128)}', space=vmem, size = 0x12000, scoped, tag = 'internal scratch']
  %s0 = inlined_call_operand.vmem [shape: bf16[32,128], index: 0, kind: input, shape index: {}]
  %s1 = inlined_call_operand.vmem [shape: bf16[128,256], index: 1, kind: input, shape index: {}]
  %s2 = inlined_call_operand.vmem [shape: bf16[128,128], index: 2, kind: input, shape index: {}]
  %s3 = inlined_call_operand.vmem [shape: f32[32,128], index: 3, kind: output, shape index: {}]
  %s4 = sld [smem:[#allocation0]]
  $region22: #{_forward.1} parent=0
    _
  %s6 = ssub.s32 1, %s4
  %s7 = scalar_select 0, %s6, %s4
  // Predicated region
  $region2: #{_forward.1} parent=0 // pred_check
    _
  $region3: #{_forward.1} parent=0 // pred_check_branch
    %9 = sbr.rel (0) target = $region5
  $region4: #{_forward.1} parent=0 // pred_region
    _
  $region5: #{_forward.1} parent=0 // pred_fallthru
    _
  // Predicated region
  $region6: #{_forward.1} parent=0 // pred_check
    _
  $region7: #{_forward.1} parent=0 // pred_check_branch
    %11 = sbr.rel (0) target = $region9
  $region8: #{_forward.1} parent=0 // pred_region
    _
  $region9: #{_forward.1} parent=0 // pred_fallthru
    _
  // Predicated region
  $region10: #{_forward.1} parent=0 // pred_check
    _
  $region11: #{_forward.1} parent=0 // pred_check_branch
    %13 = sbr.rel (0) target = $region13
  $region12: #{_forward.1} parent=0 // pred_region
    _
  $region13: #{_forward.1} parent=0 // pred_fallthru
    _
  %v15 = vld [vmem:[%s0] sm:$0xf]
  %v16 = vld [vmem:[%s0 + $0x4] sm:$0xf]
  %v17 = vld [vmem:[%s0 + $0x8] sm:$0xf]
  %v18 = vld [vmem:[%s0 + $0xc] sm:$0xf]
  %v19 = vld [vmem:[%s1] sm:$0xff]
  %v20 = vld [vmem:[%s1 + $0x8] sm:$0xff]
  %v21 = vld [vmem:[%s1 + $0x10] sm:$0xff]
  %v22 = vld [vmem:[%s1 + $0x18] sm:$0xff]
  %v23 = vld [vmem:[%s1 + $0x20] sm:$0xff]
  %v24 = vld [vmem:[%s1 + $0x28] sm:$0xff]
  %v25 = vld [vmem:[%s1 + $0x30] sm:$0xff]
  %v26 = vld [vmem:[%s1 + $0x38] sm:$0xff]
  %v27 = vld [vmem:[%s1 + $0x40] sm:$0xff]
  %v28 = vld [vmem:[%s1 + $0x48] sm:$0xff]
  %v29 = vld [vmem:[%s1 + $0x50] sm:$0xff]
  %v30 = vld [vmem:[%s1 + $0x58] sm:$0xff]
  %v31 = vld [vmem:[%s1 + $0x60] sm:$0xff]
  %v32 = vld [vmem:[%s1 + $0x68] sm:$0xff]
  %v33 = vld [vmem:[%s1 + $0x70] sm:$0xff]
  %v34 = vld [vmem:[%s1 + $0x78] sm:$0xff]
  %v39 = vunpack.c.l.b16 %v15
  %v40 = vunpack.c.l.b16 %v16
  %v41 = vunpack.c.l.b16 %v17
  %v42 = vunpack.c.l.b16 %v18
  %v43 = vpack.c.b16 %v40, %v39
  %v44 = vpack.c.b16 %v42, %v41
  %v63 = vunpack.c.l.b16 %v19
  %v64 = vunpack.c.h.b16 %v19
  %v65 = vunpack.c.l.b16 %v20
  %v66 = vunpack.c.h.b16 %v20
  %v67 = vunpack.c.l.b16 %v21
  %v68 = vunpack.c.h.b16 %v21
  %v69 = vunpack.c.l.b16 %v22
  %v70 = vunpack.c.h.b16 %v22
  %v71 = vunpack.c.l.b16 %v23
  %v72 = vunpack.c.h.b16 %v23
  %v73 = vunpack.c.l.b16 %v24
  %v74 = vunpack.c.h.b16 %v24
  %v75 = vunpack.c.l.b16 %v25
  %v76 = vunpack.c.h.b16 %v25
  %v77 = vunpack.c.l.b16 %v26
  %v78 = vunpack.c.h.b16 %v26
  %v79 = vunpack.c.l.b16 %v27
  %v80 = vunpack.c.h.b16 %v27
  %v81 = vunpack.c.l.b16 %v28
  %v82 = vunpack.c.h.b16 %v28
  %v83 = vunpack.c.l.b16 %v29
  %v84 = vunpack.c.h.b16 %v29
  %v85 = vunpack.c.l.b16 %v30
  %v86 = vunpack.c.h.b16 %v30
  %v87 = vunpack.c.l.b16 %v31
  %v88 = vunpack.c.h.b16 %v31
  %v89 = vunpack.c.l.b16 %v32
  %v90 = vunpack.c.h.b16 %v32
  %v91 = vunpack.c.l.b16 %v33
  %v92 = vunpack.c.h.b16 %v33
  %v93 = vunpack.c.l.b16 %v34
  %v94 = vunpack.c.h.b16 %v34
  %v95 = vpack.c.b16 %v65, %v63
  %v96 = vpack.c.b16 %v66, %v64
  %v97 = vpack.c.b16 %v69, %v67
  %v98 = vpack.c.b16 %v70, %v68
  %v99 = vpack.c.b16 %v73, %v71
  %v100 = vpack.c.b16 %v74, %v72
  %v101 = vpack.c.b16 %v77, %v75
  %v102 = vpack.c.b16 %v78, %v76
  %v103 = vpack.c.b16 %v81, %v79
  %v104 = vpack.c.b16 %v82, %v80
  %v105 = vpack.c.b16 %v85, %v83
  %v106 = vpack.c.b16 %v86, %v84
  %v107 = vpack.c.b16 %v89, %v87
  %v108 = vpack.c.b16 %v90, %v88
  %v109 = vpack.c.b16 %v93, %v91
  %v110 = vpack.c.b16 %v94, %v92
  %127 = vmatprep.subr.bf16.mxu0 %v110
  %128 = vmatpush1.bf16.msra.mxu0 %v109
  %129 = vmatprep.subr.bf16.mxu0 %v108
  %130 = vmatpush1.bf16.msra.mxu0 %v107
  %131 = vmatprep.subr.bf16.mxu0 %v106
  %132 = vmatpush1.bf16.msra.mxu0 %v105
  %133 = vmatprep.subr.bf16.mxu0 %v104
  %134 = vmatpush1.bf16.msra.mxu0 %v103
  %135 = vmatprep.subr.bf16.mxu0 %v102
  %136 = vmatpush1.bf16.msra.mxu0 %v101
  %137 = vmatprep.subr.bf16.mxu0 %v100
  %138 = vmatpush1.bf16.msra.mxu0 %v99
  %139 = vmatprep.subr.bf16.mxu0 %v98
  %140 = vmatpush1.bf16.msra.mxu0 %v97
  %141 = vmatprep.subr.bf16.mxu0 %v96
  %142 = vmatpush1.bf16.msra.mxu0 %v95
  %143 = vmatprep.subr.bf16.mxu0 0
  %144 = vmatpush2.bf16.msra.mxu0 0
  %145 = vmatprep.subr.bf16.mxu0 0
  %146 = vmatpush2.bf16.msra.mxu0 0
  %147 = vmatprep.subr.bf16.mxu0 0
  %148 = vmatpush2.bf16.msra.mxu0 0
  %149 = vmatprep.subr.bf16.mxu0 0
  %150 = vmatpush2.bf16.msra.mxu0 0
  %151 = vmatprep.subr.bf16.mxu0 0
  %152 = vmatpush2.bf16.msra.mxu0 0
  %153 = vmatprep.subr.bf16.mxu0 0
  %154 = vmatpush2.bf16.msra.mxu0 0
  %155 = vmatprep.subr.bf16.mxu0 0
  %156 = vmatpush2.bf16.msra.mxu0 0
  %157 = vmatprep.subr.bf16.mxu0 0
  %158 = vmatpush2.bf16.msra.mxu0 0
  %159 = vmatprep.mubr.bf16.mxu0 0
  %160 = vmatmul.mubr.bf16.gmra.mxu0 %v43
  %v161 = vpop.f32.mrf.mxu0
  %v162 = vadd.f32 0.0, %v161
  %v163 = vpop.f32.mrf.mxu0
  %v164 = vadd.f32 0.0, %v163
  %v165 = vpop.f32.mrf.mxu0
  %v166 = vadd.f32 0.0, %v165
  %v167 = vpop.f32.mrf.mxu0
  %v168 = vadd.f32 0.0, %v167
  %169 = vmatprep.mubr.bf16.mxu0 0
  %170 = vmatmul.mubr.bf16.gmra.mxu0 %v44
  %v171 = vpop.f32.mrf.mxu0
  %v172 = vadd.f32 0.0, %v171
  %v173 = vpop.f32.mrf.mxu0
  %v174 = vadd.f32 0.0, %v173
  %v175 = vpop.f32.mrf.mxu0
  %v176 = vadd.f32 0.0, %v175
  %v177 = vpop.f32.mrf.mxu0
  %v178 = vadd.f32 0.0, %v177
  %179 = vdwg.mxu0
  %v180 = vmul.f32 %v162, %v162
  %v181 = vmul.f32 %v166, %v166
  %v182 = vmul.f32 %v172, %v172
  %v183 = vmul.f32 %v176, %v176
  %v184 = vmul.f32 %v164, %v164
  %v185 = vmul.f32 %v168, %v168
  %v186 = vmul.f32 %v174, %v174
  %v187 = vmul.f32 %v178, %v178
  %v188 = vadd.f32 %v180, %v184
  %v189 = vadd.f32 %v181, %v185
  %v190 = vadd.f32 %v182, %v186
  %v191 = vadd.f32 %v183, %v187
  %v192 = vrsqrt.pop %v188
  %v193 = vmul.f32 %v188, %v192
  %vm194 = vcmp.eq.f32.partialorder %v188, inf
  %v195 = vsel %vm194, %v188, %v193
  %vm196 = vcmp.eq.f32.partialorder %v188, 0.0
  %v197 = vand.u32 %v188, 2147483648
  %v198 = vsel %vm196, %v197, %v195
  %v199 = vrsqrt.pop %v189
  %v200 = vmul.f32 %v189, %v199
  %vm201 = vcmp.eq.f32.partialorder %v189, inf
  %v202 = vsel %vm201, %v189, %v200
  %vm203 = vcmp.eq.f32.partialorder %v189, 0.0
  %v204 = vand.u32 %v189, 2147483648
  %v205 = vsel %vm203, %v204, %v202
  %v206 = vrsqrt.pop %v190
  %v207 = vmul.f32 %v190, %v206
  %vm208 = vcmp.eq.f32.partialorder %v190, inf
  %v209 = vsel %vm208, %v190, %v207
  %vm210 = vcmp.eq.f32.partialorder %v190, 0.0
  %v211 = vand.u32 %v190, 2147483648
  %v212 = vsel %vm210, %v211, %v209
  %v213 = vrsqrt.pop %v191
  %v214 = vmul.f32 %v191, %v213
  %vm215 = vcmp.eq.f32.partialorder %v191, inf
  %v216 = vsel %vm215, %v191, %v214
  %vm217 = vcmp.eq.f32.partialorder %v191, 0.0
  %v218 = vand.u32 %v191, 2147483648
  %v219 = vsel %vm217, %v218, %v216
  %v220 = vpack.c.bf16 %v205, %v198
  %v221 = vpack.c.bf16 %v219, %v212
  %v222 = vld [vmem:[%s2] sm:$0xf]
  %v223 = vld [vmem:[%s2 + $0x4] sm:$0xf]
  %v224 = vld [vmem:[%s2 + $0x8] sm:$0xf]
  %v225 = vld [vmem:[%s2 + $0xc] sm:$0xf]
  %v226 = vld [vmem:[%s2 + $0x10] sm:$0xf]
  %v227 = vld [vmem:[%s2 + $0x14] sm:$0xf]
  %v228 = vld [vmem:[%s2 + $0x18] sm:$0xf]
  %v229 = vld [vmem:[%s2 + $0x1c] sm:$0xf]
  %v230 = vld [vmem:[%s2 + $0x20] sm:$0xf]
  %v231 = vld [vmem:[%s2 + $0x24] sm:$0xf]
  %v232 = vld [vmem:[%s2 + $0x28] sm:$0xf]
  %v233 = vld [vmem:[%s2 + $0x2c] sm:$0xf]
  %v234 = vld [vmem:[%s2 + $0x30] sm:$0xf]
  %v235 = vld [vmem:[%s2 + $0x34] sm:$0xf]
  %v236 = vld [vmem:[%s2 + $0x38] sm:$0xf]
  %v237 = vld [vmem:[%s2 + $0x3c] sm:$0xf]
  %v254 = vunpack.c.l.b16 %v222
  %v255 = vunpack.c.l.b16 %v223
  %v256 = vunpack.c.l.b16 %v224
  %v257 = vunpack.c.l.b16 %v225
  %v258 = vunpack.c.l.b16 %v226
  %v259 = vunpack.c.l.b16 %v227
  %v260 = vunpack.c.l.b16 %v228
  %v261 = vunpack.c.l.b16 %v229
  %v262 = vunpack.c.l.b16 %v230
  %v263 = vunpack.c.l.b16 %v231
  %v264 = vunpack.c.l.b16 %v232
  %v265 = vunpack.c.l.b16 %v233
  %v266 = vunpack.c.l.b16 %v234
  %v267 = vunpack.c.l.b16 %v235
  %v268 = vunpack.c.l.b16 %v236
  %v269 = vunpack.c.l.b16 %v237
  %v270 = vpack.c.b16 %v255, %v254
  %v271 = vpack.c.b16 %v257, %v256
  %v272 = vpack.c.b16 %v259, %v258
  %v273 = vpack.c.b16 %v261, %v260
  %v274 = vpack.c.b16 %v263, %v262
  %v275 = vpack.c.b16 %v265, %v264
  %v276 = vpack.c.b16 %v267, %v266
  %v277 = vpack.c.b16 %v269, %v268
  %286 = vmatprep.subr.bf16.mxu0 0
  %287 = vmatpush1.bf16.msra.mxu0 %v277
  %288 = vmatprep.subr.bf16.mxu0 0
  %289 = vmatpush1.bf16.msra.mxu0 %v276
  %290 = vmatprep.subr.bf16.mxu0 0
  %291 = vmatpush1.bf16.msra.mxu0 %v275
  %292 = vmatprep.subr.bf16.mxu0 0
  %293 = vmatpush1.bf16.msra.mxu0 %v274
  %294 = vmatprep.subr.bf16.mxu0 0
  %295 = vmatpush1.bf16.msra.mxu0 %v273
  %296 = vmatprep.subr.bf16.mxu0 0
  %297 = vmatpush1.bf16.msra.mxu0 %v272
  %298 = vmatprep.subr.bf16.mxu0 0
  %299 = vmatpush1.bf16.msra.mxu0 %v271
  %300 = vmatprep.subr.bf16.mxu0 0
  %301 = vmatpush1.bf16.msra.mxu0 %v270
  %302 = vmatprep.subr.bf16.mxu0 0
  %303 = vmatpush2.bf16.msra.mxu0 0
  %304 = vmatprep.subr.bf16.mxu0 0
  %305 = vmatpush2.bf16.msra.mxu0 0
  %306 = vmatprep.subr.bf16.mxu0 0
  %307 = vmatpush2.bf16.msra.mxu0 0
  %308 = vmatprep.subr.bf16.mxu0 0
  %309 = vmatpush2.bf16.msra.mxu0 0
  %310 = vmatprep.subr.bf16.mxu0 0
  %311 = vmatpush2.bf16.msra.mxu0 0
  %312 = vmatprep.subr.bf16.mxu0 0
  %313 = vmatpush2.bf16.msra.mxu0 0
  %314 = vmatprep.subr.bf16.mxu0 0
  %315 = vmatpush2.bf16.msra.mxu0 0
  %316 = vmatprep.subr.bf16.mxu0 0
  %317 = vmatpush2.bf16.msra.mxu0 0
  %318 = vmatprep.mubr.bf16.mxu0 0
  %319 = vmatmul.mubr.bf16.gmra.mxu0 %v220
  %v320 = vpop.f32.mrf.mxu0
  %v321 = vadd.f32 0.0, %v320
  %v322 = vpop.f32.mrf.mxu0
  %v323 = vpop.f32.mrf.mxu0
  %v324 = vadd.f32 0.0, %v323
  %v325 = vpop.f32.mrf.mxu0
  %326 = vmatprep.mubr.bf16.mxu0 0
  %327 = vmatmul.mubr.bf16.gmra.mxu0 %v221
  %v328 = vpop.f32.mrf.mxu0
  %v329 = vadd.f32 0.0, %v328
  %v330 = vpop.f32.mrf.mxu0
  %v331 = vpop.f32.mrf.mxu0
  %v332 = vadd.f32 0.0, %v331
  %v333 = vpop.f32.mrf.mxu0
  %334 = vdwg.mxu0
  %v335 = vmax.f32 %v321, 1e-05
  %v336 = vmax.f32 %v324, 1e-05
  %v337 = vmax.f32 %v329, 1e-05
  %v338 = vmax.f32 %v332, 1e-05
  %v339 = vlog2.pop %v335
  %v340 = vmul.f32 %v339, 0.6931472
  %v341 = vlog2.pop %v336
  %v342 = vmul.f32 %v341, 0.6931472
  %v343 = vlog2.pop %v337
  %v344 = vmul.f32 %v343, 0.6931472
  %v345 = vlog2.pop %v338
  %v346 = vmul.f32 %v345, 0.6931472
  %347 = vst [vmem:[%s3] sm:$0xff] %v340
  %348 = vst [vmem:[%s3 + $0x8] sm:$0xff] %v342
  %349 = vst [vmem:[%s3 + $0x10] sm:$0xff] %v344
  %350 = vst [vmem:[%s3 + $0x18] sm:$0xff] %v346
  // Predicated region
  $region14: #{_forward.1} parent=0 // pred_check
    _
  $region15: #{_forward.1} parent=0 // pred_check_branch
    %352 = sbr.rel (0) target = $region17
  $region16: #{_forward.1} parent=0 // pred_region
    _
  $region17: #{_forward.1} parent=0 // pred_fallthru
    _
  // Predicated region
  $region18: #{_forward.1} parent=0 // pred_check
    _
  $region19: #{_forward.1} parent=0 // pred_check_branch
    %354 = sbr.rel (0) target = $region21
  $region20: #{_forward.1} parent=0 // pred_region
    _
  $region21: #{_forward.1} parent=0 // pred_fallthru
    _

</llo_original>
